<compile_context>
chip_gen: v7x
topology: tpu7x:2x2x1
jax: 0.10.0
libtpu: 0.0.40
codegen_flags: <defaults>
</compile_context>

<pallas_src>
from math import sqrt

import jax
import jax.numpy as jnp
from jax.experimental import pallas as pl
from jax.experimental.pallas import tpu as pltpu


# ------------------------------ helpers --------------------------------------
def _round_up(x, m):
    return ((x + m - 1) // m) * m


def _vmem_budget_bytes():
    """Usable VMEM budget for this generation (leave headroom for the compiler)."""
    cap = 64 * 1024 * 1024  # conservative fallback (v7x per-TC physical)
    try:
        info = pltpu.get_tpu_info()
        cap = int(getattr(info, "vmem_capacity_bytes", cap))
    except Exception:
        pass
    return max(int(cap * 0.70), 32 * 1024 * 1024)


def _pick_row_tile(n_pad):
    # Typical N (= batch * pre_seq_len) is a few hundred rows -> single tile.
    if n_pad <= 1024:
        return n_pad            # equals full (padded) dim -> always legal
    return 512                  # multiple of 8; ragged tail handled by cdiv


def _pick_col_tile(o, p, tm, out_itemsize, budget_bytes):
    """Largest lane-dense w2 tile whose double-buffered working set fits VMEM."""
    def est(tn):
        return (2 * tm * p * 2          # h tile, bf16, double-buffered
                + 2 * p * tn * 2        # w2 tile, bf16, double-buffered
                + 2 * tn * 2            # b2 tile
                + 2 * tm * tn * out_itemsize)  # output tile

    cap = min(_round_up(o, 128), 8192)
    tn = cap
    while tn > 128 and est(tn) > budget_bytes:
        tn -= 128
    tn = max(tn, 128)
    if tn >= o:
        tn = o                  # full dim -> always legal even if o < 128
    return tn, est(tn)


# ----------------------------- Pallas kernels ---------------------------------
def _layer1_kernel(x_ref, w1_ref, b1_ref, h_ref):
    # x: (TM, H) bf16   w1: (H, P) bf16   b1: (1, P)   h: (TM, P) bf16
    acc = jnp.dot(x_ref[...], w1_ref[...], preferred_element_type=jnp.float32)
    acc = jnp.tanh(acc + b1_ref[...].astype(jnp.float32))   # f32 tanh (v5e-safe)
    h_ref[...] = acc.astype(h_ref.dtype)


def _layer2_kernel(h_ref, w2_ref, b2_ref, o_ref):
    # h: (TM, P) bf16   w2: (P, TN) bf16   b2: (1, TN)   o: (TM, TN)
    y = jnp.dot(h_ref[...], w2_ref[...], preferred_element_type=jnp.float32)
    y = y + b2_ref[...].astype(jnp.float32)
    o_ref[...] = y.astype(o_ref.dtype)


# ------------------------------ wrapper ---------------------------------------
def prefix_mlp(x, w1, b1, w2, b2, out_dtype=jnp.float32):
    """tanh(x @ w1 + b1) @ w2 + b2 as two Pallas calls (h computed once)."""
    n, hdim = x.shape
    p = w1.shape[1]
    o = w2.shape[1]
    pdtype = w1.dtype

    # Present the kernel a bf16, sublane-aligned activation tile.
    x = x.astype(pdtype)
    n_pad = _round_up(max(n, 1), 16)
    if n_pad != n:
        x = jnp.pad(x, ((0, n_pad - n), (0, 0)))

    b1_2d = b1.reshape(1, p)
    b2_2d = b2.reshape(1, o)

    budget = _vmem_budget_bytes()
    tm = _pick_row_tile(n_pad)
    ni = pl.cdiv(n_pad, tm)

    # ---- layer 1: h = tanh(x @ w1 + b1), computed exactly once --------------
    l1_est = 2 * (tm * hdim * 2 + hdim * p * 2 + p * 2 + tm * p * 2)
    l1_vmem = int(min(max(int(l1_est * 1.25), 16 * 1024 * 1024), budget))
    h = pl.pallas_call(
        _layer1_kernel,
        out_shape=jax.ShapeDtypeStruct((n_pad, p), pdtype),
        grid_spec=pltpu.PrefetchScalarGridSpec(
            num_scalar_prefetch=0,
            grid=(ni,),
            in_specs=[
                pl.BlockSpec((tm, hdim), lambda i: (i, 0)),   # x row tile
                pl.BlockSpec((hdim, p), lambda i: (0, 0)),    # w1 resident
                pl.BlockSpec((1, p), lambda i: (0, 0)),       # b1 resident
            ],
            out_specs=pl.BlockSpec((tm, p), lambda i: (i, 0)),
        ),
        compiler_params=pltpu.CompilerParams(
            dimension_semantics=("parallel",),
            vmem_limit_bytes=l1_vmem,
        ),
    )(x, w1, b1_2d)

    # ---- layer 2: y = h @ w2 + b2, streaming w2 in lane-dense tiles ----------
    out_isz = jnp.dtype(out_dtype).itemsize
    tn, l2_est = _pick_col_tile(o, p, tm, out_isz, budget)
    nj = pl.cdiv(o, tn)
    l2_vmem = int(min(max(int(l2_est * 1.25), 32 * 1024 * 1024), budget))

    # Grid order (j outer, i inner): w2/b2 block index depends only on j, so
    # the large w2 tile stays VMEM-resident across all row tiles.
    y = pl.pallas_call(
        _layer2_kernel,
        out_shape=jax.ShapeDtypeStruct((n_pad, o), out_dtype),
        grid_spec=pltpu.PrefetchScalarGridSpec(
            num_scalar_prefetch=0,
            grid=(nj, ni),
            in_specs=[
                pl.BlockSpec((tm, p), lambda j, i: (i, 0)),   # h row tile
                pl.BlockSpec((p, tn), lambda j, i: (0, j)),   # w2 streamed tile
                pl.BlockSpec((1, tn), lambda j, i: (0, j)),   # b2 tile
            ],
            out_specs=pl.BlockSpec((tm, tn), lambda j, i: (i, j)),
        ),
        compiler_params=pltpu.CompilerParams(
            dimension_semantics=("parallel", "parallel"),     # megacore on v7x
            vmem_limit_bytes=l2_vmem,
        ),
    )(h, w2, b2_2d)

    return y[:n] if n_pad != n else y


# --------------------------- Module equivalent --------------------------------
class Config:
    def __init__(self, prefix_projection, pre_seq_len, d_kv, num_heads,
                 hidden_size, prefix_hidden_size, num_layers):
        self.prefix_projection = prefix_projection
        self.pre_seq_len = pre_seq_len
        self.d_kv = d_kv
        self.num_heads = num_heads
        self.hidden_size = hidden_size
        self.prefix_hidden_size = prefix_hidden_size
        self.num_layers = num_layers


class PrefixEncoderForT5:
    """JAX/Pallas port of the PyTorch PrefixEncoderForT5.

    Input : prefix indices (batch, prefix_len) int32
    Output: (batch, prefix_len, 2 * num_layers * d_kv * num_heads)
    Parameters are kept in bfloat16 for streaming; all accumulation is f32.
    """

    def __init__(self, config: Config, key, param_dtype=jnp.bfloat16,
                 out_dtype=jnp.float32):
        self.config = config
        self.prefix_projection = config.prefix_projection
        self.param_dtype = param_dtype
        self.out_dtype = out_dtype
        out_dim = config.num_layers * 2 * config.d_kv * config.num_heads
        emb_dim = config.d_kv * config.num_heads
        k0, k1, k2, k3, k4 = jax.random.split(key, 5)

        if self.prefix_projection:
            # nn.Embedding(pre_seq_len, d_kv * num_heads)
            self.embedding = jax.random.normal(
                k0, (config.pre_seq_len, emb_dim), jnp.float32).astype(param_dtype)
            # Linear(hidden_size, prefix_hidden_size)
            lim1 = 1.0 / sqrt(config.hidden_size)
            self.w1 = jax.random.uniform(
                k1, (config.hidden_size, config.prefix_hidden_size),
                jnp.float32, -lim1, lim1).astype(param_dtype)
            self.b1 = jax.random.uniform(
                k2, (config.prefix_hidden_size,), jnp.float32,
                -lim1, lim1).astype(param_dtype)
            # Linear(prefix_hidden_size, num_layers * 2 * d_kv * num_heads)
            lim2 = 1.0 / sqrt(config.prefix_hidden_size)
            self.w2 = jax.random.uniform(
                k3, (config.prefix_hidden_size, out_dim),
                jnp.float32, -lim2, lim2).astype(param_dtype)
            self.b2 = jax.random.uniform(
                k4, (out_dim,), jnp.float32, -lim2, lim2).astype(param_dtype)
        else:
            # nn.Embedding(pre_seq_len, num_layers * 2 * d_kv * num_heads)
            self.embedding = jax.random.normal(
                k0, (config.pre_seq_len, out_dim), jnp.float32)

    def __call__(self, prefix):
        b, t = prefix.shape
        if self.prefix_projection:
            prefix_tokens = jnp.take(self.embedding, prefix.reshape(-1), axis=0)
            pkv = prefix_mlp(prefix_tokens, self.w1, self.b1, self.w2, self.b2,
                             out_dtype=self.out_dtype)
            return pkv.reshape(b, t, -1)
        else:
            # Pure embedding gather (no matmul hot path); plain JAX.
            return jnp.take(self.embedding, prefix.reshape(-1), axis=0).reshape(b, t, -1)


# --------------------------------- Main ---------------------------------------
if __name__ == "__main__":
    key = jax.random.PRNGKey(0)
    k_params, k_idx = jax.random.split(key)

    cfg = Config(
        prefix_projection=True,
        pre_seq_len=8,
        d_kv=8,
        num_heads=4,
        hidden_size=32,           # == d_kv * num_heads (matches embedding dim)
        prefix_hidden_size=64,
        num_layers=2,
    )
    model = PrefixEncoderForT5(cfg, k_params)

    batch, prefix_len = 2, cfg.pre_seq_len
    prefix = jax.random.randint(k_idx, (batch, prefix_len), 0, cfg.pre_seq_len,
                                dtype=jnp.int32)

    out = jax.block_until_ready(model(prefix))

    # Reference in plain JAX with the same bf16 params / bf16 h / f32 accumulation.
    toks = jnp.take(model.embedding, prefix.reshape(-1), axis=0)
    h_ref = jnp.tanh(
        jnp.dot(toks, model.w1, preferred_element_type=jnp.float32)
        + model.b1.astype(jnp.float32)).astype(model.param_dtype)
    ref = (jnp.dot(h_ref, model.w2, preferred_element_type=jnp.float32)
           + model.b2.astype(jnp.float32)).reshape(batch, prefix_len, -1)

    expected_out_dim = cfg.num_layers * 2 * cfg.d_kv * cfg.num_heads
    assert out.shape == (batch, prefix_len, expected_out_dim), out.shape
    assert out.dtype == jnp.float32, out.dtype
    max_err = float(jnp.max(jnp.abs(out - ref)))
    assert jnp.allclose(out, ref, atol=3e-2, rtol=3e-2), \
        f"mismatch vs reference (max abs err {max_err})"

    print("KERNEL_OK")
</pallas_src>

<mosaic_0001>
module attributes {stable_mosaic.version = 11 : i64} {
  func.func @_layer1_kernel(%arg0: i32, %arg1: memref<16x32xbf16, #tpu.memory_space<vmem>>, %arg2: memref<32x64xbf16, #tpu.memory_space<vmem>>, %arg3: memref<1x64xbf16, #tpu.memory_space<vmem>>, %arg4: memref<16x64xbf16, #tpu.memory_space<vmem>>) attributes {dimension_semantics = [#tpu.dimension_semantics<parallel>], iteration_bounds = array<i64: 1>, scalar_prefetch = 0 : i64, scratch_operands = 0 : i64, tpu.core_type = #tpu.core_type<tc>, window_params = [{transform_indices = @transform_0, window_bounds = array<i64: 16, 32>}, {pipeline_mode = #tpu.pipeline_mode<synchronous>, transform_indices = @transform_1, window_bounds = array<i64: 32, 64>}, {pipeline_mode = #tpu.pipeline_mode<synchronous>, transform_indices = @transform_2, window_bounds = array<i64: 1, 64>}, {transform_indices = @transform_3, window_bounds = array<i64: 16, 64>}]} {
    %c0 = arith.constant 0 : index
    %c0_0 = arith.constant 0 : index
    %0 = vector.load %arg1[%c0, %c0_0] : memref<16x32xbf16, #tpu.memory_space<vmem>>, vector<16x32xbf16>
    %c0_1 = arith.constant 0 : index
    %c0_2 = arith.constant 0 : index
    %1 = vector.load %arg2[%c0_1, %c0_2] : memref<32x64xbf16, #tpu.memory_space<vmem>>, vector<32x64xbf16>
    %cst = arith.constant dense<0.000000e+00> : vector<16x64xf32>
    %2 = tpu.matmul %0, %1, %cst {dimension_numbers = #tpu.dot_dimension_numbers<[1], [0], [0], [1], [0, 0, 1, 1], [], []>} : vector<16x32xbf16>, vector<32x64xbf16>, vector<16x64xf32> -> vector<16x64xf32>
    %c0_3 = arith.constant 0 : index
    %c0_4 = arith.constant 0 : index
    %3 = vector.load %arg3[%c0_3, %c0_4] : memref<1x64xbf16, #tpu.memory_space<vmem>>, vector<1x64xbf16>
    %4 = arith.extf %3 : vector<1x64xbf16> to vector<1x64xf32>
    %5 = vector.broadcast %4 : vector<1x64xf32> to vector<16x64xf32>
    %6 = arith.addf %2, %5 : vector<16x64xf32>
    %7 = math.tanh %6 : vector<16x64xf32>
    %8 = arith.truncf %7 : vector<16x64xf32> to vector<16x64xbf16>
    %c0_5 = arith.constant 0 : index
    %c0_6 = arith.constant 0 : index
    %9 = vector.load %arg4[%c0_5, %c0_6] : memref<16x64xbf16, #tpu.memory_space<vmem>>, vector<16x64xbf16>
    tpu.vector_store %arg4[%c0_5, %c0_6], %8 {strides = array<i32>} : memref<16x64xbf16, #tpu.memory_space<vmem>>, vector<16x64xbf16>,
    return
  }
  func.func @transform_0(%arg0: i32) -> (i32, i32) {
    %c0_i32 = arith.constant 0 : i32
    %c0_i32_0 = arith.constant 0 : i32
    return %arg0, %c0_i32 : i32, i32
  }
  func.func @transform_1(%arg0: i32) -> (i32, i32) {
    %c0_i32 = arith.constant 0 : i32
    %c0_i32_0 = arith.constant 0 : i32
    %c0_i32_1 = arith.constant 0 : i32
    return %c0_i32, %c0_i32_0 : i32, i32
  }
  func.func @transform_2(%arg0: i32) -> (i32, i32) {
    %c0_i32 = arith.constant 0 : i32
    %c0_i32_0 = arith.constant 0 : i32
    %c0_i32_1 = arith.constant 0 : i32
    return %c0_i32, %c0_i32_0 : i32, i32
  }
  func.func @transform_3(%arg0: i32) -> (i32, i32) {
    %c0_i32 = arith.constant 0 : i32
    %c0_i32_0 = arith.constant 0 : i32
    return %arg0, %c0_i32 : i32, i32
  }
}

</mosaic_0001>

<llo_original>
// kernel: tpu_custom_call.1
$region0: #{tpu_custom_call.1}
  #allocation0 [shape = 'u32[]', space=smem, size = 0x4, offset = 0x4, fixed_abs, tag = 'smem constant byte address 0x4 - core index']
  #allocation1 [shape = 'u32[144,128]{1,0:T(1,128)}', space=vmem, size = 0x12000, scoped, tag = 'internal scratch']
  %s0 = inlined_call_operand.hbm [shape: bf16[16,32], index: 0, kind: input, shape index: {}]
  %s1 = inlined_call_operand.hbm [shape: bf16[32,64], index: 1, kind: input, shape index: {}]
  %s2 = inlined_call_operand.vmem [shape: bf16[1,64], index: 2, kind: input, shape index: {}]
  %s3 = inlined_call_operand.hbm [shape: bf16[16,64], index: 3, kind: output, shape index: {}]
  %s4 = sld [smem:[#allocation0]]
  $region30: #{tpu_custom_call.1} parent=0
    _
  %s6 = ssub.s32 1, %s4
  %s7 = scalar_select 0, %s6, %s4
  $region1: #{tpu_custom_call.1} parent=0
    #allocation2 [shape = 'u8[4096]{0}', space=vmem, size = 0x1000, scoped, tag = 'input window, operand 0, single buffered']
    #allocation3 [shape = 's32[1]{0}', space=sflag, size = 0x4, scoped, tag = 'scoped memory for tpu_custom_call.1']
    #allocation4 [shape = 's32[1]{0}', space=sflag, size = 0x4, scoped, tag = 'scoped memory for tpu_custom_call.1']
    #allocation5 [shape = 'u8[8192]{0}', space=vmem, size = 0x2000, scoped, tag = 'input window, operand 1, single buffered']
    #allocation6 [shape = 's32[1]{0}', space=sflag, size = 0x4, scoped, tag = 'scoped memory for tpu_custom_call.1']
    #allocation7 [shape = 'u8[4096]{0}', space=vmem, size = 0x1000, scoped, tag = 'output window, operand 0, single buffered']
    %8 = vsyncpa [#allocation3], 0
    %9 = vsyncpa [#allocation6], 0
    %10 = vsyncpa [#allocation4], 0
    // Predicated region
    $region2: #{tpu_custom_call.1} parent=1 // pred_check
      _
    $region3: #{tpu_custom_call.1} parent=1 // pred_check_branch
      %12 = sbr.rel (0) target = $region5
    $region4: #{tpu_custom_call.1} parent=1 // pred_region
      %s14 = ssub.s32 128, 128
      %15 = vsyncadd [#allocation3], %s14
      %s16 = sshll.u32 [#allocation2], 4
      %s17 = int_to_ptr.vmem [resolvable:$true] %s16
      %22 = dma.hbm_to_vmem [thread:$0]  %s0, 128, %s17, [#allocation3], 64, 64, 4
    $region5: #{tpu_custom_call.1} parent=1 // pred_fallthru
      _
    // Predicated region
    $region6: #{tpu_custom_call.1} parent=1 // pred_check
      _
    $region7: #{tpu_custom_call.1} parent=1 // pred_check_branch
      %24 = sbr.rel (0) target = $region9
    $region8: #{tpu_custom_call.1} parent=1 // pred_region
      %s26 = ssub.s32 256, 256
      %27 = vsyncadd [#allocation6], %s26
      %s28 = sshll.u32 [#allocation5], 4
      %s29 = int_to_ptr.vmem [resolvable:$true] %s28
      %34 = dma.hbm_to_vmem [thread:$0]  %s1, 256, %s29, [#allocation6], 64, 64, 4
    $region9: #{tpu_custom_call.1} parent=1 // pred_fallthru
      _
    // Predicated region
    $region10: #{tpu_custom_call.1} parent=1 // pred_check
      _
    $region11: #{tpu_custom_call.1} parent=1 // pred_check_branch
      %36 = sbr.rel (0) target = $region13
    $region12: #{tpu_custom_call.1} parent=1 // pred_region
      _
    $region13: #{tpu_custom_call.1} parent=1 // pred_fallthru
      _
    // Predicated region
    $region14: #{tpu_custom_call.1} parent=1 // pred_check
      _
    $region15: #{tpu_custom_call.1} parent=1 // pred_check_branch
      %38 = sbr.rel (0) target = $region17
    $region16: #{tpu_custom_call.1} parent=1 // pred_region
      %39 = dma.done [#allocation3], 128
    $region17: #{tpu_custom_call.1} parent=1 // pred_fallthru
      _
    // Predicated region
    $region18: #{tpu_custom_call.1} parent=1 // pred_check
      _
    $region19: #{tpu_custom_call.1} parent=1 // pred_check_branch
      %41 = sbr.rel (0) target = $region21
    $region20: #{tpu_custom_call.1} parent=1 // pred_region
      %42 = dma.done [#allocation6], 256
    $region21: #{tpu_custom_call.1} parent=1 // pred_fallthru
      _
    %v44 = vld [vmem:[#allocation2] sm:$0xf]
    %v45 = vld [vmem:[#allocation2 + $0x4] sm:$0xf]
    %v46 = vld [vmem:[#allocation5] sm:$0xf]
    %v47 = vld [vmem:[#allocation5 + $0x4] sm:$0xf]
    %v48 = vld [vmem:[#allocation5 + $0x8] sm:$0xf]
    %v49 = vld [vmem:[#allocation5 + $0xc] sm:$0xf]
    %v50 = vld [vmem:[%s2] sm:$0x1]
    %v51 = vunpack.c.l.bf16 %v50
    %v52 = vlaneseq
    %v53 = vshrl.u32 %v52, 7
    %v54 = vsub.s32 0, %v53
    %v55 = vrot.slane %v51, %v54
    %v58 = vunpack.c.l.b16 %v44
    %v59 = vunpack.c.l.b16 %v45
    %v60 = vpack.c.b16 %v59, %v58
    %v65 = vunpack.c.l.b16 %v46
    %v66 = vunpack.c.l.b16 %v47
    %v67 = vunpack.c.l.b16 %v48
    %v68 = vunpack.c.l.b16 %v49
    %v69 = vpack.c.b16 %v66, %v65
    %v70 = vpack.c.b16 %v68, %v67
    %vm73 = vcmask 261120
    %v75 = vsel %vm73, %v60, 0
    %77 = vmatprep.subr.bf16.mxu0 0
    %78 = vmatpush1.bf16.msra.mxu0 %v69
    %79 = vmatprep.subr.bf16.mxu0 0
    %80 = vmatpush1.bf16.msra.mxu0 %v70
    %81 = vmatprep.subr.bf16.mxu0 0
    %82 = vmatpush1.bf16.msra.mxu0 0
    %83 = vmatprep.subr.bf16.mxu0 0
    %84 = vmatpush1.bf16.msra.mxu0 0
    %85 = vmatprep.subr.bf16.mxu0 0
    %86 = vmatpush1.bf16.msra.mxu0 0
    %87 = vmatprep.subr.bf16.mxu0 0
    %88 = vmatpush1.bf16.msra.mxu0 0
    %89 = vmatprep.subr.bf16.mxu0 0
    %90 = vmatpush1.bf16.msra.mxu0 0
    %91 = vmatprep.subr.bf16.mxu0 0
    %92 = vmatpush1.bf16.msra.mxu0 0
    %93 = vmatprep.subr.bf16.mxu0 0
    %94 = vmatpush1.bf16.msra.mxu0 0
    %95 = vmatprep.subr.bf16.mxu0 0
    %96 = vmatpush1.bf16.msra.mxu0 0
    %97 = vmatprep.subr.bf16.mxu0 0
    %98 = vmatpush1.bf16.msra.mxu0 0
    %99 = vmatprep.subr.bf16.mxu0 0
    %100 = vmatpush1.bf16.msra.mxu0 0
    %101 = vmatprep.subr.bf16.mxu0 0
    %102 = vmatpush1.bf16.msra.mxu0 0
    %103 = vmatprep.subr.bf16.mxu0 0
    %104 = vmatpush1.bf16.msra.mxu0 0
    %105 = vmatprep.subr.bf16.mxu0 0
    %106 = vmatpush1.bf16.msra.mxu0 0
    %107 = vmatprep.subr.bf16.mxu0 0
    %108 = vmatpush1.bf16.msra.mxu0 0
    %109 = vmatprep.mubr.bf16.mxu0 0
    %110 = vmatmul.mubr.bf16.gmra.mrb[0].mxu0 %v75
    %v111 = vpop.f32.mrb[0].mxu0
    %v112 = vadd.f32 %v55, %v111
    %v113 = vpop.f32.mrb[0].mxu0
    %v114 = vpop.f32.mrb[0].mxu0
    %v115 = vadd.f32 %v55, %v114
    %v116 = vpop.f32.mrb[0].mxu0
    %117 = vdwg.mxu0
    %v118 = vtanh.pop %v112
    %v119 = vtanh.pop %v115
    %v120 = vpack.c.bf16 %v119, %v118
    %v122 = vunpack.c.l.b16 %v120
    %v123 = vunpack.c.h.b16 %v120
    %v124 = vpack.c.b16 %v122, %v122
    %v125 = vpack.c.b16 %v123, %v123
    %vm128 = vcmask 519168
    %129 = vst.msk [vmem:[#allocation7] sm:$0xf] %vm128, %v124
    %130 = vst.msk [vmem:[#allocation7 + $0x4] sm:$0xf] %vm128, %v125
    // Predicated region
    $region22: #{tpu_custom_call.1} parent=1 // pred_check
      _
    $region23: #{tpu_custom_call.1} parent=1 // pred_check_branch
      %132 = sbr.rel (0) target = $region25
    $region24: #{tpu_custom_call.1} parent=1 // pred_region
      %s134 = ssub.s32 128, 128
      %135 = vsyncadd [#allocation4], %s134
      %s136 = sshll.u32 [#allocation7], 4
      %s137 = int_to_ptr.vmem [resolvable:$true] %s136
      %142 = dma.vmem_to_hbm [thread:$0]  %s137, 128, %s3, [#allocation4], 64, 64, 4
    $region25: #{tpu_custom_call.1} parent=1 // pred_fallthru
      _
    // Predicated region
    $region26: #{tpu_custom_call.1} parent=1 // pred_check
      _
    $region27: #{tpu_custom_call.1} parent=1 // pred_check_branch
      %144 = sbr.rel (0) target = $region29
    $region28: #{tpu_custom_call.1} parent=1 // pred_region
      %145 = dma.done [#allocation4], 128
    $region29: #{tpu_custom_call.1} parent=1 // pred_fallthru
      _
    %146 = vsyncpa [#allocation3], 1
    %147 = vsyncpa [#allocation6], 1
    %148 = vsyncpa [#allocation4], 1

</llo_original>
